<compile_context>
chip_gen: v6e
topology: v6e:2x2x1
jax: 0.10.0
libtpu: 0.0.40
codegen_flags: <defaults>
</compile_context>

<pallas_src>
import jax
import jax.numpy as jnp
from jax.experimental import pallas as pl
from jax.experimental.pallas import tpu as pltpu


_LEAKY_SLOPE = 0.01          # nn.LeakyReLU() default negative_slope
_TEMP_BUDGET = 20 << 20      # bytes budgeted for the ~3 live (TA, N) f32 tile temps
_MAX_TILE = 512              # per-step overhead amortization cap (v5e/v6e/v7x)


def _choose_tile(n):
    """j rows per grid step: always a multiple of 8, sized from the VMEM temp budget."""
    n8 = max(8, -(-n // 8) * 8)            # j extent padded to a sublane multiple
    lane_n = -(-n // 128) * 128            # i extent padded to a lane multiple
    budget_rows = (_TEMP_BUDGET // (3 * 4 * lane_n)) // 8 * 8
    ta = max(8, min(_MAX_TILE, n8, budget_rows))
    nt = -(-n8 // ta)
    return ta, nt, nt * ta


def _make_edge_attn_kernel(ta, n, ragged):
    """ta: j rows per step (multiple of 8); n: true node count; ragged: mask padded j."""
    ng = ta // 8

    def kernel(f1_ref, f2_ref, f2max_ref, o_ref, acc_ref):
        b = pl.program_id(0)          # batch (parallel)
        t = pl.program_id(1)          # j-tile (reduction axis)

        @pl.when(t == 0)
        def _init():
            acc_ref[...] = jnp.zeros_like(acc_ref)

        f1_col = f1_ref[0]                                     # (TA, 1) rows index j
        f2_row = f2_ref[0]                                     # (1, N)  lanes index i
        f2_max = f2max_ref[b]                                  # scalar: max_i f2[b, i]

        # logits[j, i] = LeakyReLU(f1[j] + f2[i]); the stability max over i folds
        # through the monotone LeakyReLU: m[j] = LeakyReLU(f1[j] + max_i f2[i]).
        logits = f1_col + f2_row                               # (TA, N)
        logits = jnp.maximum(logits, _LEAKY_SLOPE * logits)    # LeakyReLU, 2 VALU ops
        m = f1_col + f2_max
        m = jnp.maximum(m, _LEAKY_SLOPE * m)                   # (TA, 1)

        e = jnp.exp(logits - m)                                # (TA, N)  EUP
        d = jnp.sum(e, axis=1, keepdims=True)                  # (TA, 1)  lane reduce
        contrib = e * pl.reciprocal(d, approx=True)            # coefs[i, j] tile

        if ragged:                                             # zero padded j rows
            row = jax.lax.broadcasted_iota(jnp.int32, (ta, 1), 0)
            contrib = jnp.where(t * ta + row < n, contrib, 0.0)

        # Partial sublane accumulation: TA rows -> 8 rows with pure VALU adds over the
        # 8-row vreg groups (balanced tree); the 8 -> 1 rotate-reduce is deferred to
        # the finalize step so it runs once per batch instead of once per tile.
        parts = [contrib[g * 8:(g + 1) * 8, :] for g in range(ng)]
        while len(parts) > 1:
            nxt = [a + c for a, c in zip(parts[0::2], parts[1::2])]
            if len(parts) % 2:
                nxt.append(parts[-1])
            parts = nxt
        acc_ref[...] += parts[0]

        @pl.when(t == pl.num_programs(1) - 1)
        def _finalize():
            s = jnp.sum(acc_ref[...], axis=0, keepdims=True)   # (1, N): sum_j coefs[i, j]
            s = s - jnp.max(s, axis=1, keepdims=True)
            es = jnp.exp(s)
            # exact reciprocal: runs once per batch on a single (1, N) row
            o_ref[0] = (es / jnp.sum(es, axis=1, keepdims=True)).astype(o_ref.dtype)

    return kernel


def edge_attn(x, w1, b1, a1, ba1, a2, ba2):
    """x: (B, N, C).  Conv weights in matmul form:
       w1: (C, F) = conv1.weight[:, :, 0].T,  b1: (F,)   = conv1.bias
       a1: (F, 1) = conv2_1.weight[:, :, 0].T, ba1: ()   = conv2_1.bias  (same for 2_2)
       Returns (B, 1, N)."""
    B, N, C = x.shape

    # Algebraic fold: the output never uses seq_fts itself, so
    #   f1[b, j] = x[b, j] . (w1 @ a1) + (b1.a1 + ba1 + b1.a2 + ba2)   (all bias in f1)
    #   f2[b, i] = x[b, i] . (w1 @ a2)
    # These tiny per-node projections (and max_i f2) are hoisted to XLA so the kernel
    # holds no x, does no MXU work and no transposes.
    u1 = (w1 @ a1)[:, 0].astype(jnp.float32)                   # (C,)
    u2 = (w1 @ a2)[:, 0].astype(jnp.float32)                   # (C,)
    c_sum = (jnp.dot(b1, a1[:, 0]) + ba1
             + jnp.dot(b1, a2[:, 0]) + ba2).astype(jnp.float32)

    xf = x.astype(jnp.float32)
    f1 = jnp.einsum('bnc,c->bn', xf, u1) + c_sum               # (B, N)
    f2 = jnp.einsum('bnc,c->bn', xf, u2)                       # (B, N)
    f2_max = jnp.max(f2, axis=1)                               # (B,)

    ta, nt, n_pad = _choose_tile(N)
    ragged = (n_pad != N)

    # f1 as a tiny (j, 1) column block stream; f2 as a lane-dense row resident over t.
    f1_col = jnp.pad(f1, ((0, 0), (0, n_pad - N)))[..., None]  # (B, n_pad, 1)
    f2_row = f2[:, None, :]                                    # (B, 1, N)

    kernel = _make_edge_attn_kernel(ta, N, ragged)

    # VMEM sizing (f32 bytes, (8,128)-tile padded) instead of a hard-coded limit.
    lane_n = -(-N // 128) * 128
    temp_bytes = 3 * ta * lane_n * 4                 # logits / e / contrib tiles
    resident = (2 * ta * 128 * 4                     # f1 (ta,1) blocks, double-buffered
                + 2 * 2 * 8 * lane_n * 4             # f2 + out rows, double-buffered
                + 8 * lane_n * 4)                    # (8, N) accumulator scratch
    vmem_limit = int(min(56 << 20, max(16 << 20, 2 * temp_bytes + resident + (2 << 20))))

    return pl.pallas_call(
        kernel,
        out_shape=jax.ShapeDtypeStruct((B, 1, N), x.dtype),
        grid_spec=pltpu.PrefetchScalarGridSpec(
            num_scalar_prefetch=0,
            grid=(B, nt),
            in_specs=[
                pl.BlockSpec((1, ta, 1), lambda b, t: (b, t, 0)),    # f1 j-tile column
                pl.BlockSpec((1, 1, N), lambda b, t: (b, 0, 0)),     # f2 row, resident over t
                pl.BlockSpec(memory_space=pltpu.MemorySpace.SMEM),   # per-batch max_i f2
            ],
            out_specs=pl.BlockSpec((1, 1, N), lambda b, t: (b, 0, 0)),
            scratch_shapes=[
                pltpu.VMEM((8, N), jnp.float32),     # partial sum_j coefs[i, j]
            ],
        ),
        compiler_params=pltpu.CompilerParams(
            dimension_semantics=("parallel", "arbitrary"),
            vmem_limit_bytes=vmem_limit,
        ),
    )(f1_col, f2_row, f2_max)


def edge_attn_ref(x, w1, b1, a1, ba1, a2, ba2):
    """Pure-JAX reference mirroring the PyTorch forward literally (no fold)."""
    seq_fts = jnp.einsum('bnc,cf->bnf', x, w1) + b1                 # (B, N, F)
    f1 = jnp.einsum('bnf,f->bn', seq_fts, a1[:, 0]) + ba1           # (B, N) = f_1[b,0,:]
    f2 = jnp.einsum('bnf,f->bn', seq_fts, a2[:, 0]) + ba2           # (B, N) = f_2[b,0,:]
    logits = f1[:, None, :] + f2[:, :, None]                        # [b,i,j] = f1[j]+f2[i]
    logits = jnp.where(logits > 0, logits, 0.01 * logits)           # LeakyReLU(0.01)
    coefs = jax.nn.softmax(logits, axis=1)                          # over i
    s = jnp.sum(coefs, axis=-1)                                     # (B, N)
    return jax.nn.softmax(s, axis=1)[:, None, :]                    # (B, 1, N)


if __name__ == "__main__":
    B, N, C, Fsz = 2, 16, 8, 32   # batch, nodes, in_channel, out_sz

    key = jax.random.PRNGKey(0)
    ks = jax.random.split(key, 7)
    x   = jax.random.normal(ks[0], (B, N, C), jnp.float32)
    w1  = jax.random.normal(ks[1], (C, Fsz), jnp.float32) * 0.2
    b1  = jax.random.normal(ks[2], (Fsz,),   jnp.float32) * 0.1
    a1  = jax.random.normal(ks[3], (Fsz, 1), jnp.float32) * 0.2
    ba1 = jax.random.normal(ks[4], (),       jnp.float32) * 0.1
    a2  = jax.random.normal(ks[5], (Fsz, 1), jnp.float32) * 0.2
    ba2 = jax.random.normal(ks[6], (),       jnp.float32) * 0.1

    out = edge_attn(x, w1, b1, a1, ba1, a2, ba2)
    out = jax.block_until_ready(out)

    ref = edge_attn_ref(x, w1, b1, a1, ba1, a2, ba2)
    err = float(jnp.max(jnp.abs(out - ref)))
    assert out.shape == (B, 1, N), out.shape
    # approx=True reciprocal in the per-tile path gives ~1e-4-level relative error
    assert jnp.allclose(out, ref, atol=2e-3, rtol=2e-3), f"max abs err {err}"

    print("KERNEL_OK")
</pallas_src>

<mosaic_0001>
module attributes {stable_mosaic.version = 11 : i64} {
  func.func @kernel(%arg0: i32, %arg1: i32, %arg2: memref<1x16x1xf32, #tpu.memory_space<vmem>>, %arg3: memref<1x1x16xf32, #tpu.memory_space<vmem>>, %arg4: memref<2xf32, #tpu.memory_space<smem>>, %arg5: memref<1x1x16xf32, #tpu.memory_space<vmem>>, %arg6: memref<8x16xf32, #tpu.memory_space<vmem>>) attributes {dimension_semantics = [#tpu.dimension_semantics<parallel>, #tpu.dimension_semantics<arbitrary>], iteration_bounds = array<i64: 2, 1>, scalar_prefetch = 0 : i64, scratch_operands = 1 : i64, tpu.core_type = #tpu.core_type<tc>, window_params = [{transform_indices = @transform_0, window_bounds = array<i64: 1, 16, 1>}, {transform_indices = @transform_1, window_bounds = array<i64: 1, 1, 16>}, {transform_indices = @transform_2, window_bounds = array<i64: 2>}, {transform_indices = @transform_3, window_bounds = array<i64: 1, 1, 16>}]} {
    %c0_i32 = arith.constant 0 : i32
    %0 = arith.cmpi eq, %arg1, %c0_i32 : i32
    %1 = arith.extui %0 : i1 to i32
    %c0_i32_0 = arith.constant 0 : i32
    %2 = arith.cmpi ne, %1, %c0_i32_0 : i32
    scf.if %2 {
      %cst_14 = arith.constant 0.000000e+00 : f32
      %37 = vector.broadcast %cst_14 : f32 to vector<8x16xf32>
      %c0_15 = arith.constant 0 : index
      %c0_16 = arith.constant 0 : index
      %38 = vector.load %arg6[%c0_15, %c0_16] : memref<8x16xf32, #tpu.memory_space<vmem>>, vector<8x16xf32>
      tpu.vector_store %arg6[%c0_15, %c0_16], %37 {strides = array<i32>} : memref<8x16xf32, #tpu.memory_space<vmem>>, vector<8x16xf32>,
    } else {
    }
    %c0 = arith.constant 0 : index
    %c0_1 = arith.constant 0 : index
    %c0_2 = arith.constant 0 : index
    %3 = vector.load %arg2[%c0, %c0_1, %c0_2] : memref<1x16x1xf32, #tpu.memory_space<vmem>>, vector<1x16x1xf32>
    %4 = vector.shape_cast %3 : vector<1x16x1xf32> to vector<16x1xf32>
    %c0_3 = arith.constant 0 : index
    %c0_4 = arith.constant 0 : index
    %c0_5 = arith.constant 0 : index
    %5 = vector.load %arg3[%c0_3, %c0_4, %c0_5] : memref<1x1x16xf32, #tpu.memory_space<vmem>>, vector<1x1x16xf32>
    %6 = vector.shape_cast %5 : vector<1x1x16xf32> to vector<1x16xf32>
    %7 = arith.index_cast %arg0 : i32 to index
    %8 = memref.load %arg4[%7] : memref<2xf32, #tpu.memory_space<smem>>
    %9 = vector.broadcast %4 : vector<16x1xf32> to vector<16x16xf32>
    %10 = vector.broadcast %6 : vector<1x16xf32> to vector<16x16xf32>
    %11 = arith.addf %9, %10 : vector<16x16xf32>
    %cst = arith.constant 0.00999999977 : f32
    %12 = vector.broadcast %cst : f32 to vector<16x16xf32>
    %13 = arith.mulf %12, %11 : vector<16x16xf32>
    %14 = arith.maximumf %11, %13 : vector<16x16xf32>
    %15 = vector.broadcast %8 : f32 to vector<16x1xf32>
    %16 = arith.addf %4, %15 : vector<16x1xf32>
    %cst_6 = arith.constant 0.00999999977 : f32
    %17 = vector.broadcast %cst_6 : f32 to vector<16x1xf32>
    %18 = arith.mulf %17, %16 : vector<16x1xf32>
    %19 = arith.maximumf %16, %18 : vector<16x1xf32>
    %20 = vector.broadcast %19 : vector<16x1xf32> to vector<16x16xf32>
    %21 = arith.subf %14, %20 : vector<16x16xf32>
    %22 = math.exp %21 : vector<16x16xf32>
    %cst_7 = arith.constant dense<0.000000e+00> : vector<16xf32>
    %23 = vector.multi_reduction <add>, %22, %cst_7 [1] : vector<16x16xf32> to vector<16xf32>
    %24 = vector.shape_cast %23 : vector<16xf32> to vector<16x1xf32>
    %25 = tpu.reciprocal %24 {approx = true} : vector<16x1xf32> -> vector<16x1xf32>
    %26 = vector.broadcast %25 : vector<16x1xf32> to vector<16x16xf32>
    %27 = arith.mulf %22, %26 : vector<16x16xf32>
    %28 = vector.extract_strided_slice %27 {offsets = [0, 0], sizes = [8, 16], strides = [1, 1]} : vector<16x16xf32> to vector<8x16xf32>
    %29 = vector.extract_strided_slice %27 {offsets = [8, 0], sizes = [8, 16], strides = [1, 1]} : vector<16x16xf32> to vector<8x16xf32>
    %30 = arith.addf %28, %29 : vector<8x16xf32>
    %c0_8 = arith.constant 0 : index
    %c0_9 = arith.constant 0 : index
    %31 = vector.load %arg6[%c0_8, %c0_9] : memref<8x16xf32, #tpu.memory_space<vmem>>, vector<8x16xf32>
    %32 = arith.addf %31, %30 : vector<8x16xf32>
    %c0_10 = arith.constant 0 : index
    %c0_11 = arith.constant 0 : index
    %33 = vector.load %arg6[%c0_10, %c0_11] : memref<8x16xf32, #tpu.memory_space<vmem>>, vector<8x16xf32>
    tpu.vector_store %arg6[%c0_10, %c0_11], %32 {strides = array<i32>} : memref<8x16xf32, #tpu.memory_space<vmem>>, vector<8x16xf32>,
    %c0_i32_12 = arith.constant 0 : i32
    %34 = arith.cmpi eq, %arg1, %c0_i32_12 : i32
    %35 = arith.extui %34 : i1 to i32
    %c0_i32_13 = arith.constant 0 : i32
    %36 = arith.cmpi ne, %35, %c0_i32_13 : i32
    scf.if %36 {
      %c0_14 = arith.constant 0 : index
      %c0_15 = arith.constant 0 : index
      %37 = vector.load %arg6[%c0_14, %c0_15] : memref<8x16xf32, #tpu.memory_space<vmem>>, vector<8x16xf32>
      %cst_16 = arith.constant dense<0.000000e+00> : vector<16xf32>
      %38 = vector.multi_reduction <add>, %37, %cst_16 [0] : vector<8x16xf32> to vector<16xf32>
      %39 = vector.shape_cast %38 : vector<16xf32> to vector<1x16xf32>
      %cst_17 = arith.constant dense<0xFF800000> : vector<1xf32>
      %40 = vector.multi_reduction <maximumf>, %39, %cst_17 [1] : vector<1x16xf32> to vector<1xf32>
      %41 = vector.shape_cast %40 : vector<1xf32> to vector<1x1xf32>
      %42 = vector.broadcast %41 : vector<1x1xf32> to vector<1x16xf32>
      %43 = arith.subf %39, %42 : vector<1x16xf32>
      %44 = math.exp %43 : vector<1x16xf32>
      %cst_18 = arith.constant dense<0.000000e+00> : vector<1xf32>
      %45 = vector.multi_reduction <add>, %44, %cst_18 [1] : vector<1x16xf32> to vector<1xf32>
      %46 = vector.shape_cast %45 : vector<1xf32> to vector<1x1xf32>
      %47 = vector.broadcast %46 : vector<1x1xf32> to vector<1x16xf32>
      %48 = arith.divf %44, %47 : vector<1x16xf32>
      %c0_19 = arith.constant 0 : index
      %c0_20 = arith.constant 0 : index
      %c0_21 = arith.constant 0 : index
      %49 = vector.load %arg5[%c0_19, %c0_20, %c0_21] : memref<1x1x16xf32, #tpu.memory_space<vmem>>, vector<1x1x16xf32>
      %50 = vector.shape_cast %49 : vector<1x1x16xf32> to vector<1x16xf32>
      %51 = vector.shape_cast %48 : vector<1x16xf32> to vector<1x1x16xf32>
      tpu.vector_store %arg5[%c0_19, %c0_20, %c0_21], %51 {strides = array<i32>} : memref<1x1x16xf32, #tpu.memory_space<vmem>>, vector<1x1x16xf32>,
    } else {
    }
    return
  }
  func.func @transform_0(%arg0: i32, %arg1: i32) -> (i32, i32, i32) {
    %c0_i32 = arith.constant 0 : i32
    %c0_i32_0 = arith.constant 0 : i32
    return %arg0, %arg1, %c0_i32 : i32, i32, i32
  }
  func.func @transform_1(%arg0: i32, %arg1: i32) -> (i32, i32, i32) {
    %c0_i32 = arith.constant 0 : i32
    %c0_i32_0 = arith.constant 0 : i32
    %c0_i32_1 = arith.constant 0 : i32
    return %arg0, %c0_i32, %c0_i32_0 : i32, i32, i32
  }
  func.func @transform_2(%arg0: i32, %arg1: i32) -> i32 {
    %c0_i32 = arith.constant 0 : i32
    %c0_i32_0 = arith.constant 0 : i32
    return %c0_i32 : i32
  }
  func.func @transform_3(%arg0: i32, %arg1: i32) -> (i32, i32, i32) {
    %c0_i32 = arith.constant 0 : i32
    %c0_i32_0 = arith.constant 0 : i32
    %c0_i32_1 = arith.constant 0 : i32
    return %arg0, %c0_i32, %c0_i32_0 : i32, i32, i32
  }
}

</mosaic_0001>

<llo_original>
// kernel: tpu_custom_call.1
$region0: #{tpu_custom_call.1}
  #allocation0 [shape = 'u32[]', space=smem, size = 0x4, offset = 0x4, fixed_abs, tag = 'smem constant byte address 0x4 - core index']
  #allocation1 [shape = 'u32[144,128]{1,0:T(1,128)}', space=vmem, size = 0x12000, scoped, tag = 'internal scratch']
  #allocation2 [shape = 'f32[8,16]{1,0:T(8,128)}', space=vmem, size = 0x1000, scoped, tag = 'scratch operand']
  %s0 = inlined_call_operand.vmem [shape: f32[2,16,1], index: 0, kind: input, shape index: {}]
  %s1 = inlined_call_operand.vmem [shape: f32[2,1,16], index: 1, kind: input, shape index: {}]
  %s2 = inlined_call_operand.vmem [shape: f32[2], index: 2, kind: input, shape index: {}]
  %s3 = inlined_call_operand.hbm [shape: f32[2,1,16], index: 3, kind: output, shape index: {}]
  %s4 = sld [smem:[#allocation0]]
  $region57: #{tpu_custom_call.1} parent=0
    _
  %s6 = ssub.s32 1, %s4
  %s7 = scalar_select 0, %s6, %s4
  $region1: #{tpu_custom_call.1} parent=0
    #allocation3 [shape = 'u8[512]{0}', space=smem, size = 0x200, scoped, tag = 'input window, operand 2, single buffered']
    #allocation4 [shape = 's32[2]{0}', space=sflag, size = 0x8, scoped, tag = 'scoped memory for tpu_custom_call.1']
    #allocation5 [shape = 's32[2]{0}', space=sflag, size = 0x8, scoped, tag = 'scoped memory for tpu_custom_call.1']
    #allocation6 [shape = 'u8[1024]{0}', space=vmem, size = 0x400, scoped, tag = 'output window, operand 0']
    %8 = vsyncpa [#allocation5], 0
    %9 = vsyncpa [#allocation4], 0
    %s10 = scalar_lea.sflag [#allocation4], 1
    %11 = vsyncpa %s10, 0
    loop: start=0, step=1, limit=4
    $region2: #{tpu_custom_call.1} parent=1 // loop_pre_header
      _
    $region3: #{tpu_custom_call.1} parent=1 // loop_header
      %s13 = sphi 0, %s17
      %p14 = scmp.ge.s32.totalorder %s13, 4
      %s20 = sphi 0, %s32
      %s21 = sphi 0, %s28
      %s22 = sphi 0, %s20
      %s23 = sphi 0, %s21
      %s24 = sphi 0, %s22
      %s25 = sphi 0, %s23
      %s37 = sphi 0, %s39
      %s40 = sphi 0, %s37
      %s41 = sphi 0, %s40
      %s57 = sphi 0, %s41
      %s63 = sphi 0, %s65
      %s66 = sphi 0, %s63
      %s67 = sphi 0, %s66
      %s83 = sphi 0, %s67
      %s87 = sphi 0, %s87
      %s89 = sphi 0, %s87
      %s90 = sphi 0, %s89
      %s104 = sphi 0, %s90
      %s110 = sphi 0, %s112
      %s113 = sphi 0, %s110
      %s114 = sphi 0, %s113
      %s130 = sphi 0, %s114
    $region4: #{tpu_custom_call.1} parent=1 // loop_header_branch
      %16 = sbr.rel (%p14) target = $region8
    $region5: #{tpu_custom_call.1} parent=1 // loop_body
      %s18 = ssub.s32 %s13, 1
      %s19 = ssub.s32 %s13, 2
      %s26 = sadd.s32 1, %s21
      %p27 = scmp.ge.s32.totalorder %s26, 1
      %s28 = scalar_select %p27, 0, %s26
      %s29 = sadd.s32 1, %s20
      %s30 = scalar_select %p27, %s29, %s20
      %p31 = scmp.ge.s32.totalorder %s30, 2
      %s32 = scalar_select %p31, 0, %s30
      %s33 = ssub.s32 %s20, %s32
      %s34 = ssub.s32 %s21, %s28
      %s35 = sor.u32 %s33, %s34
      %p36 = scmp.eq.s32.totalorder %s35, 0
      %s38 = sadd.s32 %s37, 1
      %s39 = scalar_select %p36, %s37, %s38
      %p42 = pneg %p36
      %p43 = scmp.eq.s32.totalorder %s13, 1
      %p44 = por %p42, %p43
      %p45 = scmp.ne.s32.totalorder %s37, %s40
      %p46 = scmp.eq.s32.totalorder %s13, 0
      %p47 = por %p45, %p46
      %p48 = scmp.ne.s32.totalorder %s37, %s40
      %p49 = scmp.eq.s32.totalorder %s18, 1
      %p50 = por %p48, %p49
      %p51 = scmp.ne.s32.totalorder %s40, %s41
      %p52 = scmp.eq.s32.totalorder %s18, 0
      %p53 = por %p51, %p52
      %p54 = scmp.ne.s32.totalorder %s40, %s41
      %p55 = scmp.eq.s32.totalorder %s19, 1
      %p56 = por %p54, %p55
      %p58 = scmp.ne.s32.totalorder %s41, %s57
      %p59 = scmp.eq.s32.totalorder %s19, 0
      %p60 = por %p58, %p59
      %s61 = ssub.s32 %s20, %s32
      %p62 = scmp.eq.s32.totalorder %s61, 0
      %s64 = sadd.s32 %s63, 1
      %s65 = scalar_select %p62, %s63, %s64
      %p68 = pneg %p62
      %p69 = scmp.eq.s32.totalorder %s13, 1
      %p70 = por %p68, %p69
      %p71 = scmp.ne.s32.totalorder %s63, %s66
      %p72 = scmp.eq.s32.totalorder %s13, 0
      %p73 = por %p71, %p72
      %p74 = scmp.ne.s32.totalorder %s63, %s66
      %p75 = scmp.eq.s32.totalorder %s18, 1
      %p76 = por %p74, %p75
      %p77 = scmp.ne.s32.totalorder %s66, %s67
      %p78 = scmp.eq.s32.totalorder %s18, 0
      %p79 = por %p77, %p78
      %p80 = scmp.ne.s32.totalorder %s66, %s67
      %p81 = scmp.eq.s32.totalorder %s19, 1
      %p82 = por %p80, %p81
      %p84 = scmp.ne.s32.totalorder %s67, %s83
      %p85 = scmp.eq.s32.totalorder %s19, 0
      %p86 = por %p84, %p85
      %s88 = sadd.s32 %s87, 1
      %p91 = scmp.eq.s32.totalorder %s13, 1
      %p92 = scmp.ne.s32.totalorder %s87, %s89
      %p93 = scmp.eq.s32.totalorder %s13, 0
      %p94 = por %p92, %p93
      %p95 = scmp.ne.s32.totalorder %s87, %s89
      %p96 = scmp.eq.s32.totalorder %s18, 1
      %p97 = por %p95, %p96
      %p98 = scmp.ne.s32.totalorder %s89, %s90
      %p99 = scmp.eq.s32.totalorder %s18, 0
      %p100 = por %p98, %p99
      %p101 = scmp.ne.s32.totalorder %s89, %s90
      %p102 = scmp.eq.s32.totalorder %s19, 1
      %p103 = por %p101, %p102
      %p105 = scmp.ne.s32.totalorder %s90, %s104
      %p106 = scmp.eq.s32.totalorder %s19, 0
      %p107 = por %p105, %p106
      %s108 = ssub.s32 %s20, %s32
      %p109 = scmp.eq.s32.totalorder %s108, 0
      %s111 = sadd.s32 %s110, 1
      %s112 = scalar_select %p109, %s110, %s111
      %p115 = pneg %p109
      %p116 = scmp.eq.s32.totalorder %s13, 1
      %p117 = por %p115, %p116
      %p118 = scmp.ne.s32.totalorder %s110, %s113
      %p119 = scmp.eq.s32.totalorder %s13, 0
      %p120 = por %p118, %p119
      %p121 = scmp.ne.s32.totalorder %s110, %s113
      %p122 = scmp.eq.s32.totalorder %s18, 1
      %p123 = por %p121, %p122
      %p124 = scmp.ne.s32.totalorder %s113, %s114
      %p125 = scmp.eq.s32.totalorder %s18, 0
      %p126 = por %p124, %p125
      %p127 = scmp.ne.s32.totalorder %s113, %s114
      %p128 = scmp.eq.s32.totalorder %s19, 1
      %p129 = por %p127, %p128
      %p131 = scmp.ne.s32.totalorder %s114, %s130
      %p132 = scmp.eq.s32.totalorder %s19, 0
      %p133 = por %p131, %p132
      %p134 = scmp.le.s32.totalorder 1, %s13
      %p135 = scmp.lt.s32.totalorder %s13, 3
      %p136 = pnand %p134, %p135
      %p137 = pneg %p136
      // Predicated region
      $region9: #{tpu_custom_call.1} parent=5 // pred_check
        _
      $region10: #{tpu_custom_call.1} parent=5 // pred_check_branch
        %139 = sbr.rel (%p136) target = $region12
      $region11: #{tpu_custom_call.1} parent=5 // pred_region
        %s140 = ssub.s32 %s13, 1
        // Predicated region
        $region13: #{tpu_custom_call.1} parent=11 // pred_check
          %p141 = pneg %p100
        $region14: #{tpu_custom_call.1} parent=11 // pred_check_branch
          %143 = sbr.rel (%p141) target = $region16
        $region15: #{tpu_custom_call.1} parent=11 // pred_region
          %s145 = ssub.s32 16, 16
          %146 = vsyncadd [#allocation5], %s145
          %s148 = sshll.u32 %s2, 4
          %s149 = int_to_ptr.vmem [resolvable:$true] %s148
          %151 = dma.vmem_to_smem %s149, 16, [#allocation3], [#allocation5]
        $region16: #{tpu_custom_call.1} parent=11 // pred_fallthru
          _
      $region12: #{tpu_custom_call.1} parent=5 // pred_fallthru
        _
      %p152 = scmp.lt.s32.totalorder %s13, 2
      // Predicated region
      $region17: #{tpu_custom_call.1} parent=5 // pred_check
        %p153 = pneg %p152
      $region18: #{tpu_custom_call.1} parent=5 // pred_check_branch
        %155 = sbr.rel (%p153) target = $region20
      $region19: #{tpu_custom_call.1} parent=5 // pred_region
        // Predicated region
        $region21: #{tpu_custom_call.1} parent=19 // pred_check
          %p156 = pneg %p47
        $region22: #{tpu_custom_call.1} parent=19 // pred_check_branch
          %158 = sbr.rel (%p156) target = $region24
        $region23: #{tpu_custom_call.1} parent=19 // pred_region
          %s159 = smul.u32 2, %s21
          %p160 = scmp.lt.s32.totalorder %s20, 1
          %s161 = scalar_select %p160, %s20, 1
          %p162 = scmp.lt.s32.totalorder %s159, 1
          %s163 = scalar_select %p162, %s159, 1
          %s164 = smul.addr %s161, 2
          %s165 = sadd.s32 %s163, %s164
          %s166 = smul.addr %s165, 8
          %s167 = scalar_lea.vmem %s0, %s166
          %s168 = smul.u32 2, %s21
        $region24: #{tpu_custom_call.1} parent=19 // pred_fallthru
          _
        // Predicated region
        $region25: #{tpu_custom_call.1} parent=19 // pred_check
          %p169 = pneg %p73
        $region26: #{tpu_custom_call.1} parent=19 // pred_check_branch
          %171 = sbr.rel (%p169) target = $region28
        $region27: #{tpu_custom_call.1} parent=19 // pred_region
          %p172 = scmp.lt.s32.totalorder %s20, 1
          %s173 = scalar_select %p172, %s20, 1
          %s174 = scalar_lea.vmem %s1, %s173
        $region28: #{tpu_custom_call.1} parent=19 // pred_fallthru
          _
      $region20: #{tpu_custom_call.1} parent=5 // pred_fallthru
        _
      %p175 = scmp.le.s32.totalorder 1, %s13
      %p176 = scmp.lt.s32.totalorder %s13, 3
      %p177 = pnand %p175, %p176
      %p178 = pneg %p177
      // Predicated region
      $region29: #{tpu_custom_call.1} parent=5 // pred_check
        _
      $region30: #{tpu_custom_call.1} parent=5 // pred_check_branch
        %180 = sbr.rel (%p177) target = $region32
      $region31: #{tpu_custom_call.1} parent=5 // pred_region
        %s181 = ssub.s32 %s13, 1
        // Predicated region
        $region33: #{tpu_custom_call.1} parent=31 // pred_check
          %p182 = pneg %p100
        $region34: #{tpu_custom_call.1} parent=31 // pred_check_branch
          %184 = sbr.rel (%p182) target = $region36
        $region35: #{tpu_custom_call.1} parent=31 // pred_region
          %185 = dma.done [#allocation5], 16
        $region36: #{tpu_custom_call.1} parent=31 // pred_fallthru
          _
        %186 = sfence
        %s187 = smul.u32 2, %s23
        %p188 = scmp.lt.s32.totalorder %s22, 1
        %s189 = scalar_select %p188, %s22, 1
        %p190 = scmp.lt.s32.totalorder %s187, 1
        %s191 = scalar_select %p190, %s187, 1
        %s192 = smul.addr %s189, 2
        %s193 = sadd.s32 %s191, %s192
        %s194 = smul.addr %s193, 8
        %s195 = scalar_lea.vmem %s0, %s194
        %p196 = pneg %p53
        %p197 = pneg %p50
        %p198 = scmp.lt.s32.totalorder %s22, 1
        %s199 = scalar_select %p198, %s22, 1
        %s200 = scalar_lea.vmem %s1, %s199
        %p201 = pneg %p79
        %p202 = pneg %p76
        %p203 = pneg %p100
        %p204 = pneg %p97
        %p205 = pneg %p126
        %p206 = pneg %p123
        %s207 = sand.u32 %s113, 1
        %s208 = scalar_lea.sflag [#allocation4], %s207
        %s209 = sand.u32 %s113, 1
        %s210 = scalar_lea.vmem [#allocation6], %s209
        %s211 = smul.u32 2, %s23
        %p212 = scmp.lt.s32.totalorder %s22, 1
        %s213 = scalar_select %p212, %s22, 1
        %p214 = scmp.lt.s32.totalorder %s211, 1
        %s215 = scalar_select %p214, %s211, 1
        %s216 = smul.addr %s213, 2
        %s217 = sadd.s32 %s215, %s216
        %s218 = smul.addr %s217, 8
        %s219 = scalar_lea.vmem %s0, %s218
        %s220 = smul.u32 2, %s23
        %p221 = scmp.lt.s32.totalorder %s22, 1
        %s222 = scalar_select %p221, %s22, 1
        %s223 = scalar_lea.vmem %s1, %s222
        %p224 = scmp.eq.s32.totalorder %s23, 0
        // Predicated region
        $region37: #{tpu_custom_call.1} parent=31 // pred_check
          %p225 = pneg %p224
        $region38: #{tpu_custom_call.1} parent=31 // pred_check_branch
          %227 = sbr.rel (%p225) target = $region40
        $region39: #{tpu_custom_call.1} parent=31 // pred_region
          %vm228 = vcmask 130048
          %229 = vst.msk [vmem:[#allocation2] sm:$0xff] %vm228, 0.0
        $region40: #{tpu_custom_call.1} parent=31 // pred_fallthru
          _
        %v230 = vld [vmem:[%s219] sm:$0xff]
        %v231 = vld [vmem:[%s219 + $0x8] sm:$0xff]
        %v232 = vld [vmem:[%s223] sm:$0x1]
        %s233 = sld [smem:[#allocation3 + %s22]]
        %235 = vset.pattern.permute.xlu0 0
        %236 = vperm.xlu0 %235, %v230
        %v237 = vpop.permute.xlu0 %236
        %240 = vset.pattern.permute.xlu0 0
        %241 = vperm.xlu0 %240, %v231
        %v242 = vpop.permute.xlu0 %241
        %v245 = vlaneseq
        %v246 = vshrl.u32 %v245, 7
        %v247 = vsub.s32 0, %v246
        %v248 = vrot.slane %v232, %v247
        %v250 = vadd.f32 %v237, %v248
        %v251 = vadd.f32 %v242, %v248
        %v252 = vmul.f32 %v250, 0.01
        %v253 = vmul.f32 %v251, 0.01
        %v254 = vmax.f32 %v250, %v252
        %v255 = vmax.f32 %v251, %v253
        %v256 = vstv %s233
        %v257 = vadd.f32 %v230, %v256
        %v258 = vadd.f32 %v231, %v256
        %v259 = vmul.f32 %v257, 0.01
        %v260 = vmul.f32 %v258, 0.01
        %v261 = vmax.f32 %v257, %v259
        %v262 = vmax.f32 %v258, %v260
        %264 = vset.pattern.permute.xlu0 0
        %265 = vperm.xlu0 %264, %v261
        %v266 = vpop.permute.xlu0 %265
        %269 = vset.pattern.permute.xlu0 0
        %270 = vperm.xlu0 %269, %v262
        %v271 = vpop.permute.xlu0 %270
        %v273 = vsub.f32 %v254, %v266
        %v274 = vsub.f32 %v255, %v271
        %v275 = vmul.f32 %v273, 1.442695
        %v276 = vpow.pop %v275
        %v277 = vmul.f32 %v274, 1.442695
        %v278 = vpow.pop %v277
        %vm279 = vcmask 130048
        %v280 = vsel %vm279, %v276, 0.0
        %281 = vadd.xlane.f32.xlu0 %v280
        %v282 = vpop.xlane.xlu0 %281
        %v283 = vsel %vm279, %v278, 0.0
        %284 = vadd.xlane.f32.xlu0 %v283
        %v285 = vpop.xlane.xlu0 %284
        %v286 = vrcp.pop %v282
        %v287 = vrcp.pop %v285
        %v288 = vmul.f32 %v276, %v286
        %v289 = vmul.f32 %v278, %v287
        %v290 = vadd.f32 %v288, %v289
        %v291 = vld [vmem:[#allocation2] sm:$0xff]
        %v292 = vadd.f32 %v291, %v290
        %293 = vst.msk [vmem:[#allocation2] sm:$0xff] %vm279, %v292
        // Predicated region
        $region41: #{tpu_custom_call.1} parent=31 // pred_check
          %p294 = pneg %p224
        $region42: #{tpu_custom_call.1} parent=31 // pred_check_branch
          %296 = sbr.rel (%p294) target = $region44
        $region43: #{tpu_custom_call.1} parent=31 // pred_region
          %v297 = vld [vmem:[#allocation2] sm:$0xff]
          %v298 = vsel %vm279, %v297, 0.0
          %v299 = vrot.slane %v298, 4
          %v300 = vadd.f32 %v298, %v299
          %v301 = vrot.slane %v300, 2
          %v302 = vadd.f32 %v300, %v301
          %v303 = vrot.slane %v302, 1
          %v304 = vadd.f32 %v302, %v303
          %v305 = vsel %vm279, %v304, -inf
          %306 = vmax.xlane.f32.xlu0 %v305
          %v307 = vpop.xlane.xlu0 %306
          %v308 = vsub.f32 %v304, %v307
          %v309 = vmul.f32 %v308, 1.442695
          %v310 = vpow.pop %v309
          %v311 = vsel %vm279, %v310, 0.0
          %312 = vadd.xlane.f32.xlu0 %v311
          %v313 = vpop.xlane.xlu0 %312
          %v314 = vrcp.pop %v313
          %v315 = vmul.f32 %v310, %v314
          %vm316 = vcmask 122880
          %317 = vst.msk [vmem:[%s210] sm:$0x1] %vm316, %v315
        $region44: #{tpu_custom_call.1} parent=31 // pred_fallthru
          _
        %s318 = sand.u32 %s113, 1
        %s319 = scalar_lea.sflag [#allocation4], %s318
        %s320 = sand.u32 %s113, 1
        %s321 = scalar_lea.vmem [#allocation6], %s320
        // Predicated region
        $region45: #{tpu_custom_call.1} parent=31 // pred_check
          %p322 = pneg %p123
        $region46: #{tpu_custom_call.1} parent=31 // pred_check_branch
          %324 = sbr.rel (%p322) target = $region48
        $region47: #{tpu_custom_call.1} parent=31 // pred_region
          %s326 = ssub.s32 16, 16
          %327 = vsyncadd %s319, %s326
          %s328 = smul.addr %s22, 16
          %s329 = scalar_lea.hbm %s3, %s328
          %s331 = sshll.u32 %s321, 4
          %s332 = int_to_ptr.vmem [resolvable:$true] %s331
          %334 = dma.vmem_to_hbm [thread:$0]  %s332, 16, %s329, %s319
        $region48: #{tpu_custom_call.1} parent=31 // pred_fallthru
          _
      $region32: #{tpu_custom_call.1} parent=5 // pred_fallthru
        _
      %p335 = scmp.le.s32.totalorder 2, %s13
      // Predicated region
      $region49: #{tpu_custom_call.1} parent=5 // pred_check
        %p336 = pneg %p335
      $region50: #{tpu_custom_call.1} parent=5 // pred_check_branch
        %338 = sbr.rel (%p336) target = $region52
      $region51: #{tpu_custom_call.1} parent=5 // pred_region
        %s339 = ssub.s32 %s13, 2
        // Predicated region
        $region53: #{tpu_custom_call.1} parent=51 // pred_check
          %p340 = pneg %p129
        $region54: #{tpu_custom_call.1} parent=51 // pred_check_branch
          %342 = sbr.rel (%p340) target = $region56
        $region55: #{tpu_custom_call.1} parent=51 // pred_region
          %s343 = sand.u32 %s114, 1
          %s344 = scalar_lea.sflag [#allocation4], %s343
          %s345 = sand.u32 %s114, 1
          %s346 = scalar_lea.vmem [#allocation6], %s345
          %347 = dma.done %s344, 16
        $region56: #{tpu_custom_call.1} parent=51 // pred_fallthru
          _
      $region52: #{tpu_custom_call.1} parent=5 // pred_fallthru
        _
    $region6: #{tpu_custom_call.1} parent=1 // loop_footer
      %s17 = sadd.s32 1, %s13
    $region7: #{tpu_custom_call.1} parent=1 // loop_footer_branch
      %12 = sbr.rel target = $region3
    $region8: #{tpu_custom_call.1} parent=1 // loop_exit
      _
    %348 = vsyncpa [#allocation4], 1
    %s349 = scalar_lea.sflag [#allocation4], 1
    %350 = vsyncpa %s349, 1
    %351 = vsyncpa [#allocation5], 1
    %s352 = scalar_lea.sflag [#allocation5], 1
    %353 = vsyncpa %s352, 1

</llo_original>
